<compile_context>
chip_gen: v7x
topology: tpu7x:2x2x1
jax: 0.10.0
libtpu: 0.0.40
codegen_flags: <defaults>
</compile_context>

<pallas_src>
import functools

import jax
import jax.numpy as jnp
from jax.experimental import pallas as pl
from jax.experimental.pallas import tpu as pltpu


def _head_kernel(x_ref, w1_ref, b1_ref, g_ref, beta_ref, w2_ref, b2_ref, o_ref):
    # CLS tile: [TILE_B, E] f32 -> bf16 for the MXU, accumulate in f32.
    x = x_ref[...].astype(jnp.bfloat16)

    # dense: x @ W1 + b1   (W1 is [E, E] = torch weight transposed, bf16)
    h = jnp.dot(x, w1_ref[...], preferred_element_type=jnp.float32) + b1_ref[...]

    # dropout: identity in eval/inference mode
    # TODO(synk): training-mode dropout (pltpu.prng_* + mask) not implemented; eval semantics used.

    # LayerNorm over last dim, eps = 1e-5 (torch default), elementwise affine.
    # Kept fully in f32 (XLU reductions + EUP rsqrt are off the MXU path).
    mean = jnp.mean(h, axis=-1, keepdims=True)
    var = jnp.mean((h - mean) * (h - mean), axis=-1, keepdims=True)
    hn = (h - mean) * jax.lax.rsqrt(var + 1e-5)
    hn = hn * g_ref[...] + beta_ref[...]

    # out_proj: hn @ W2 + b2   (W2 is [E, C_pad] bf16, lane-dense output)
    logits = jnp.dot(hn.astype(jnp.bfloat16), w2_ref[...],
                     preferred_element_type=jnp.float32) + b2_ref[...]

    o_ref[...] = logits.astype(o_ref.dtype)


@functools.partial(jax.jit, static_argnames=("tile_b",))
def classification_head(features, params, *, tile_b=128):
    """features: [B, S, E] float32 -> logits: [B, C]"""
    B, S, E = features.shape
    C = params["w2"].shape[1]

    # Only the CLS row enters the kernel.
    x = features[:, 0, :]  # [B, E]

    # Batch tiling: multiple of 8 sublanes, at most `tile_b`.
    if B < tile_b:
        tile_b = ((B + 7) // 8) * 8
    b_pad = pl.cdiv(B, tile_b) * tile_b
    if b_pad != B:
        x = jnp.pad(x, ((0, b_pad - B), (0, 0)))

    # Lane-dense out_proj: pad class dim up to a multiple of 128.
    c_pad = ((C + 127) // 128) * 128

    # bf16 weights (MXU native); biases / LN params stay f32.
    w1 = params["w1"].astype(jnp.bfloat16)                                   # [E, E]
    w2 = jnp.pad(params["w2"], ((0, 0), (0, c_pad - C))).astype(jnp.bfloat16)  # [E, c_pad]
    b1 = params["b1"]                                                        # [1, E]
    b2 = jnp.pad(params["b2"], ((0, 0), (0, c_pad - C)))                     # [1, c_pad]
    gamma, beta = params["gamma"], params["beta"]                            # [1, E]

    grid = (b_pad // tile_b,)
    cost = pl.CostEstimate(
        flops=2 * b_pad * E * E + 2 * b_pad * E * c_pad,
        transcendentals=b_pad,
        bytes_accessed=(b_pad * E * 4            # CLS activations in
                        + E * E * 2              # w1 (bf16)
                        + E * c_pad * 2          # w2 (bf16)
                        + 3 * E * 4 + c_pad * 4  # biases / LN params
                        + b_pad * c_pad * 4),    # logits out
    )

    out = pl.pallas_call(
        _head_kernel,
        out_shape=jax.ShapeDtypeStruct((b_pad, c_pad), features.dtype),
        grid_spec=pltpu.PrefetchScalarGridSpec(
            num_scalar_prefetch=0,
            grid=grid,
            in_specs=[
                pl.BlockSpec((tile_b, E), lambda i: (i, 0)),   # CLS tile (pipelined)
                pl.BlockSpec((E, E), lambda i: (0, 0)),        # w1 (resident)
                pl.BlockSpec((1, E), lambda i: (0, 0)),        # b1
                pl.BlockSpec((1, E), lambda i: (0, 0)),        # gamma
                pl.BlockSpec((1, E), lambda i: (0, 0)),        # beta
                pl.BlockSpec((E, c_pad), lambda i: (0, 0)),    # w2 (resident)
                pl.BlockSpec((1, c_pad), lambda i: (0, 0)),    # b2
            ],
            out_specs=pl.BlockSpec((tile_b, c_pad), lambda i: (i, 0)),
        ),
        compiler_params=pltpu.CompilerParams(
            dimension_semantics=("parallel",),
            vmem_limit_bytes=48 * 1024 * 1024,   # fits v7x's 64 MiB with headroom
        ),
        cost_estimate=cost,
    )(x, w1, b1, gamma, beta, w2, b2)

    return out[:B, :C]


def init_params(key, embed_dim, num_classes, dtype=jnp.float32):
    k1, k2, k3, k4 = jax.random.split(key, 4)
    scale1 = 1.0 / jnp.sqrt(embed_dim)
    # stored as [in, out] (transpose of torch's [out, in]); y = x @ W + b
    w1 = jax.random.uniform(k1, (embed_dim, embed_dim), dtype, -scale1, scale1)
    b1 = jax.random.uniform(k2, (1, embed_dim), dtype, -scale1, scale1)
    gamma = jnp.ones((1, embed_dim), dtype)
    beta = jnp.zeros((1, embed_dim), dtype)
    w2 = jax.random.uniform(k3, (embed_dim, num_classes), dtype, -scale1, scale1)
    b2 = jax.random.uniform(k4, (1, num_classes), dtype, -scale1, scale1)
    return {"w1": w1, "b1": b1, "gamma": gamma, "beta": beta, "w2": w2, "b2": b2}


def reference_head(features, params):
    x = features[:, 0, :]
    h = x @ params["w1"] + params["b1"]
    mean = jnp.mean(h, axis=-1, keepdims=True)
    var = jnp.mean((h - mean) ** 2, axis=-1, keepdims=True)
    hn = (h - mean) / jnp.sqrt(var + 1e-5)
    hn = hn * params["gamma"] + params["beta"]
    return hn @ params["w2"] + params["b2"]


if __name__ == "__main__":
    B, S, E, C = 2, 8, 32, 4  # batch, seq, embed_dim, num_classes
    key = jax.random.PRNGKey(0)
    kf, kp = jax.random.split(key)
    features = jax.random.normal(kf, (B, S, E), jnp.float32)
    params = init_params(kp, E, C)

    logits = classification_head(features, params)
    jax.block_until_ready(logits)

    ref = reference_head(features, params)
    assert logits.shape == (B, C)
    # bf16 weights inside the kernel -> relaxed tolerance vs. f32 reference.
    assert jnp.allclose(logits, ref, atol=5e-2, rtol=5e-2), (
        float(jnp.max(jnp.abs(logits - ref))))
    print("KERNEL_OK")
</pallas_src>

<mosaic_0001>
module attributes {stable_mosaic.version = 11 : i64} {
  func.func @_head_kernel(%arg0: i32, %arg1: memref<8x32xf32, #tpu.memory_space<vmem>>, %arg2: memref<32x32xbf16, #tpu.memory_space<vmem>>, %arg3: memref<1x32xf32, #tpu.memory_space<vmem>>, %arg4: memref<1x32xf32, #tpu.memory_space<vmem>>, %arg5: memref<1x32xf32, #tpu.memory_space<vmem>>, %arg6: memref<32x128xbf16, #tpu.memory_space<vmem>>, %arg7: memref<1x128xf32, #tpu.memory_space<vmem>>, %arg8: memref<8x128xf32, #tpu.memory_space<vmem>>) attributes {dimension_semantics = [#tpu.dimension_semantics<parallel>], iteration_bounds = array<i64: 1>, scalar_prefetch = 0 : i64, scratch_operands = 0 : i64, tpu.core_type = #tpu.core_type<tc>, window_params = [{transform_indices = @transform_0, window_bounds = array<i64: 8, 32>}, {pipeline_mode = #tpu.pipeline_mode<synchronous>, transform_indices = @transform_1, window_bounds = array<i64: 32, 32>}, {pipeline_mode = #tpu.pipeline_mode<synchronous>, transform_indices = @transform_2, window_bounds = array<i64: 1, 32>}, {pipeline_mode = #tpu.pipeline_mode<synchronous>, transform_indices = @transform_3, window_bounds = array<i64: 1, 32>}, {pipeline_mode = #tpu.pipeline_mode<synchronous>, transform_indices = @transform_4, window_bounds = array<i64: 1, 32>}, {pipeline_mode = #tpu.pipeline_mode<synchronous>, transform_indices = @transform_5, window_bounds = array<i64: 32, 128>}, {pipeline_mode = #tpu.pipeline_mode<synchronous>, transform_indices = @transform_6, window_bounds = array<i64: 1, 128>}, {transform_indices = @transform_7, window_bounds = array<i64: 8, 128>}]} {
    %c0 = arith.constant 0 : index
    %c0_0 = arith.constant 0 : index
    %0 = vector.load %arg1[%c0, %c0_0] : memref<8x32xf32, #tpu.memory_space<vmem>>, vector<8x32xf32>
    %1 = arith.truncf %0 : vector<8x32xf32> to vector<8x32xbf16>
    %c0_1 = arith.constant 0 : index
    %c0_2 = arith.constant 0 : index
    %2 = vector.load %arg2[%c0_1, %c0_2] : memref<32x32xbf16, #tpu.memory_space<vmem>>, vector<32x32xbf16>
    %cst = arith.constant dense<0.000000e+00> : vector<8x32xf32>
    %3 = tpu.matmul %1, %2, %cst {dimension_numbers = #tpu.dot_dimension_numbers<[1], [0], [0], [1], [0, 0, 1, 1], [], []>} : vector<8x32xbf16>, vector<32x32xbf16>, vector<8x32xf32> -> vector<8x32xf32>
    %c0_3 = arith.constant 0 : index
    %c0_4 = arith.constant 0 : index
    %4 = vector.load %arg3[%c0_3, %c0_4] : memref<1x32xf32, #tpu.memory_space<vmem>>, vector<1x32xf32>
    %5 = vector.broadcast %4 : vector<1x32xf32> to vector<8x32xf32>
    %6 = arith.addf %3, %5 : vector<8x32xf32>
    %cst_5 = arith.constant dense<0.000000e+00> : vector<8xf32>
    %7 = vector.multi_reduction <add>, %6, %cst_5 [1] : vector<8x32xf32> to vector<8xf32>
    %8 = vector.shape_cast %7 : vector<8xf32> to vector<8x1xf32>
    %cst_6 = arith.constant 3.200000e+01 : f32
    %9 = vector.broadcast %cst_6 : f32 to vector<8x1xf32>
    %10 = arith.divf %8, %9 : vector<8x1xf32>
    %11 = vector.broadcast %10 : vector<8x1xf32> to vector<8x32xf32>
    %12 = arith.subf %6, %11 : vector<8x32xf32>
    %13 = vector.broadcast %10 : vector<8x1xf32> to vector<8x32xf32>
    %14 = arith.subf %6, %13 : vector<8x32xf32>
    %15 = arith.mulf %12, %14 : vector<8x32xf32>
    %cst_7 = arith.constant dense<0.000000e+00> : vector<8xf32>
    %16 = vector.multi_reduction <add>, %15, %cst_7 [1] : vector<8x32xf32> to vector<8xf32>
    %17 = vector.shape_cast %16 : vector<8xf32> to vector<8x1xf32>
    %cst_8 = arith.constant 3.200000e+01 : f32
    %18 = vector.broadcast %cst_8 : f32 to vector<8x1xf32>
    %19 = arith.divf %17, %18 : vector<8x1xf32>
    %20 = vector.broadcast %10 : vector<8x1xf32> to vector<8x32xf32>
    %21 = arith.subf %6, %20 : vector<8x32xf32>
    %cst_9 = arith.constant 9.99999974E-6 : f32
    %22 = vector.broadcast %cst_9 : f32 to vector<8x1xf32>
    %23 = arith.addf %19, %22 : vector<8x1xf32>
    %24 = math.rsqrt %23 : vector<8x1xf32>
    %25 = vector.broadcast %24 : vector<8x1xf32> to vector<8x32xf32>
    %26 = arith.mulf %21, %25 : vector<8x32xf32>
    %c0_10 = arith.constant 0 : index
    %c0_11 = arith.constant 0 : index
    %27 = vector.load %arg4[%c0_10, %c0_11] : memref<1x32xf32, #tpu.memory_space<vmem>>, vector<1x32xf32>
    %28 = vector.broadcast %27 : vector<1x32xf32> to vector<8x32xf32>
    %29 = arith.mulf %26, %28 : vector<8x32xf32>
    %c0_12 = arith.constant 0 : index
    %c0_13 = arith.constant 0 : index
    %30 = vector.load %arg5[%c0_12, %c0_13] : memref<1x32xf32, #tpu.memory_space<vmem>>, vector<1x32xf32>
    %31 = vector.broadcast %30 : vector<1x32xf32> to vector<8x32xf32>
    %32 = arith.addf %29, %31 : vector<8x32xf32>
    %33 = arith.truncf %32 : vector<8x32xf32> to vector<8x32xbf16>
    %c0_14 = arith.constant 0 : index
    %c0_15 = arith.constant 0 : index
    %34 = vector.load %arg6[%c0_14, %c0_15] : memref<32x128xbf16, #tpu.memory_space<vmem>>, vector<32x128xbf16>
    %cst_16 = arith.constant dense<0.000000e+00> : vector<8x128xf32>
    %35 = tpu.matmul %33, %34, %cst_16 {dimension_numbers = #tpu.dot_dimension_numbers<[1], [0], [0], [1], [0, 0, 1, 1], [], []>} : vector<8x32xbf16>, vector<32x128xbf16>, vector<8x128xf32> -> vector<8x128xf32>
    %c0_17 = arith.constant 0 : index
    %c0_18 = arith.constant 0 : index
    %36 = vector.load %arg7[%c0_17, %c0_18] : memref<1x128xf32, #tpu.memory_space<vmem>>, vector<1x128xf32>
    %37 = vector.broadcast %36 : vector<1x128xf32> to vector<8x128xf32>
    %38 = arith.addf %35, %37 : vector<8x128xf32>
    %c0_19 = arith.constant 0 : index
    %c0_20 = arith.constant 0 : index
    %39 = vector.load %arg8[%c0_19, %c0_20] : memref<8x128xf32, #tpu.memory_space<vmem>>, vector<8x128xf32>
    tpu.vector_store %arg8[%c0_19, %c0_20], %38 {strides = array<i32>} : memref<8x128xf32, #tpu.memory_space<vmem>>, vector<8x128xf32>,
    return
  }
  func.func @transform_0(%arg0: i32) -> (i32, i32) {
    %c0_i32 = arith.constant 0 : i32
    %c0_i32_0 = arith.constant 0 : i32
    return %arg0, %c0_i32 : i32, i32
  }
  func.func @transform_1(%arg0: i32) -> (i32, i32) {
    %c0_i32 = arith.constant 0 : i32
    %c0_i32_0 = arith.constant 0 : i32
    %c0_i32_1 = arith.constant 0 : i32
    return %c0_i32, %c0_i32_0 : i32, i32
  }
  func.func @transform_2(%arg0: i32) -> (i32, i32) {
    %c0_i32 = arith.constant 0 : i32
    %c0_i32_0 = arith.constant 0 : i32
    %c0_i32_1 = arith.constant 0 : i32
    return %c0_i32, %c0_i32_0 : i32, i32
  }
  func.func @transform_3(%arg0: i32) -> (i32, i32) {
    %c0_i32 = arith.constant 0 : i32
    %c0_i32_0 = arith.constant 0 : i32
    %c0_i32_1 = arith.constant 0 : i32
    return %c0_i32, %c0_i32_0 : i32, i32
  }
  func.func @transform_4(%arg0: i32) -> (i32, i32) {
    %c0_i32 = arith.constant 0 : i32
    %c0_i32_0 = arith.constant 0 : i32
    %c0_i32_1 = arith.constant 0 : i32
    return %c0_i32, %c0_i32_0 : i32, i32
  }
  func.func @transform_5(%arg0: i32) -> (i32, i32) {
    %c0_i32 = arith.constant 0 : i32
    %c0_i32_0 = arith.constant 0 : i32
    %c0_i32_1 = arith.constant 0 : i32
    return %c0_i32, %c0_i32_0 : i32, i32
  }
  func.func @transform_6(%arg0: i32) -> (i32, i32) {
    %c0_i32 = arith.constant 0 : i32
    %c0_i32_0 = arith.constant 0 : i32
    %c0_i32_1 = arith.constant 0 : i32
    return %c0_i32, %c0_i32_0 : i32, i32
  }
  func.func @transform_7(%arg0: i32) -> (i32, i32) {
    %c0_i32 = arith.constant 0 : i32
    %c0_i32_0 = arith.constant 0 : i32
    return %arg0, %c0_i32 : i32, i32
  }
}

</mosaic_0001>

<llo_original>
// kernel: classification_head.1
$region0: #{classification_head.1}
  #allocation0 [shape = 'u32[]', space=smem, size = 0x4, offset = 0x4, fixed_abs, tag = 'smem constant byte address 0x4 - core index']
  #allocation1 [shape = 'u32[144,128]{1,0:T(1,128)}', space=vmem, size = 0x12000, scoped, tag = 'internal scratch']
  %s0 = inlined_call_operand.vmem [shape: f32[8,32], index: 0, kind: input, shape index: {}]
  %s1 = inlined_call_operand.vmem [shape: bf16[32,32], index: 1, kind: input, shape index: {}]
  %s2 = inlined_call_operand.vmem [shape: f32[1,32], index: 2, kind: input, shape index: {}]
  %s3 = inlined_call_operand.vmem [shape: f32[1,32], index: 3, kind: input, shape index: {}]
  %s4 = inlined_call_operand.vmem [shape: f32[1,32], index: 4, kind: input, shape index: {}]
  %s5 = inlined_call_operand.vmem [shape: bf16[32,128], index: 5, kind: input, shape index: {}]
  %s6 = inlined_call_operand.vmem [shape: f32[1,128], index: 6, kind: input, shape index: {}]
  %s7 = inlined_call_operand.vmem [shape: f32[8,128], index: 7, kind: output, shape index: {}]
  %s8 = sld [smem:[#allocation0]]
  $region38: #{classification_head.1} parent=0
    _
  %s10 = ssub.s32 1, %s8
  %s11 = scalar_select 0, %s10, %s8
  // Predicated region
  $region2: #{classification_head.1} parent=0 // pred_check
    _
  $region3: #{classification_head.1} parent=0 // pred_check_branch
    %13 = sbr.rel (0) target = $region5
  $region4: #{classification_head.1} parent=0 // pred_region
    _
  $region5: #{classification_head.1} parent=0 // pred_fallthru
    _
  // Predicated region
  $region6: #{classification_head.1} parent=0 // pred_check
    _
  $region7: #{classification_head.1} parent=0 // pred_check_branch
    %15 = sbr.rel (0) target = $region9
  $region8: #{classification_head.1} parent=0 // pred_region
    _
  $region9: #{classification_head.1} parent=0 // pred_fallthru
    _
  // Predicated region
  $region10: #{classification_head.1} parent=0 // pred_check
    _
  $region11: #{classification_head.1} parent=0 // pred_check_branch
    %17 = sbr.rel (0) target = $region13
  $region12: #{classification_head.1} parent=0 // pred_region
    _
  $region13: #{classification_head.1} parent=0 // pred_fallthru
    _
  // Predicated region
  $region14: #{classification_head.1} parent=0 // pred_check
    _
  $region15: #{classification_head.1} parent=0 // pred_check_branch
    %19 = sbr.rel (0) target = $region17
  $region16: #{classification_head.1} parent=0 // pred_region
    _
  $region17: #{classification_head.1} parent=0 // pred_fallthru
    _
  // Predicated region
  $region18: #{classification_head.1} parent=0 // pred_check
    _
  $region19: #{classification_head.1} parent=0 // pred_check_branch
    %21 = sbr.rel (0) target = $region21
  $region20: #{classification_head.1} parent=0 // pred_region
    _
  $region21: #{classification_head.1} parent=0 // pred_fallthru
    _
  // Predicated region
  $region22: #{classification_head.1} parent=0 // pred_check
    _
  $region23: #{classification_head.1} parent=0 // pred_check_branch
    %23 = sbr.rel (0) target = $region25
  $region24: #{classification_head.1} parent=0 // pred_region
    _
  $region25: #{classification_head.1} parent=0 // pred_fallthru
    _
  // Predicated region
  $region26: #{classification_head.1} parent=0 // pred_check
    _
  $region27: #{classification_head.1} parent=0 // pred_check_branch
    %25 = sbr.rel (0) target = $region29
  $region28: #{classification_head.1} parent=0 // pred_region
    _
  $region29: #{classification_head.1} parent=0 // pred_fallthru
    _
  %v27 = vld [vmem:[%s0] sm:$0xff]
  %v28 = vpack.c.bf16 %v27, %v27
  %v29 = vld [vmem:[%s1] sm:$0xf]
  %v30 = vld [vmem:[%s1 + $0x4] sm:$0xf]
  %v31 = vld [vmem:[%s1 + $0x8] sm:$0xf]
  %v32 = vld [vmem:[%s1 + $0xc] sm:$0xf]
  %v33 = vld [vmem:[%s2] sm:$0x1]
  %v35 = vlaneseq
  %v36 = vshrl.u32 %v35, 7
  %v37 = vsub.s32 0, %v36
  %v38 = vrot.slane %v33, %v37
  %v44 = vunpack.c.l.b16 %v29
  %v45 = vunpack.c.l.b16 %v30
  %v46 = vunpack.c.l.b16 %v31
  %v47 = vunpack.c.l.b16 %v32
  %v48 = vpack.c.b16 %v45, %v44
  %v49 = vpack.c.b16 %v47, %v46
  %vm52 = vcmask 261120
  %v54 = vsel %vm52, %v28, 0
  %56 = vmatprep.subr.bf16.mxu0 0
  %57 = vmatpush1.bf16.msra.mxu0 %v48
  %58 = vmatprep.subr.bf16.mxu0 0
  %59 = vmatpush1.bf16.msra.mxu0 %v49
  %60 = vmatprep.subr.bf16.mxu0 0
  %61 = vmatpush1.bf16.msra.mxu0 0
  %62 = vmatprep.subr.bf16.mxu0 0
  %63 = vmatpush1.bf16.msra.mxu0 0
  %64 = vmatprep.subr.bf16.mxu0 0
  %65 = vmatpush1.bf16.msra.mxu0 0
  %66 = vmatprep.subr.bf16.mxu0 0
  %67 = vmatpush1.bf16.msra.mxu0 0
  %68 = vmatprep.subr.bf16.mxu0 0
  %69 = vmatpush1.bf16.msra.mxu0 0
  %70 = vmatprep.subr.bf16.mxu0 0
  %71 = vmatpush1.bf16.msra.mxu0 0
  %72 = vmatprep.subr.bf16.mxu0 0
  %73 = vmatpush1.bf16.msra.mxu0 0
  %74 = vmatprep.subr.bf16.mxu0 0
  %75 = vmatpush1.bf16.msra.mxu0 0
  %76 = vmatprep.subr.bf16.mxu0 0
  %77 = vmatpush1.bf16.msra.mxu0 0
  %78 = vmatprep.subr.bf16.mxu0 0
  %79 = vmatpush1.bf16.msra.mxu0 0
  %80 = vmatprep.subr.bf16.mxu0 0
  %81 = vmatpush1.bf16.msra.mxu0 0
  %82 = vmatprep.subr.bf16.mxu0 0
  %83 = vmatpush1.bf16.msra.mxu0 0
  %84 = vmatprep.subr.bf16.mxu0 0
  %85 = vmatpush1.bf16.msra.mxu0 0
  %86 = vmatprep.subr.bf16.mxu0 0
  %87 = vmatpush1.bf16.msra.mxu0 0
  %88 = vmatprep.mubr.bf16.mxu0 0
  %89 = vmatmul.mubr.bf16.gmra.mrb[0].mxu0 %v54
  %v90 = vpop.f32.mrb[0].mxu0
  %v91 = vadd.f32 %v38, %v90
  %v92 = vpop.f32.mrb[0].mxu0
  %v93 = vpop.f32.mrb[0].mxu0
  %v94 = vpop.f32.mrb[0].mxu0
  %95 = vdwg.mxu0
  %v96 = vsel %vm52, %v91, 0.0
  %97 = vadd.xlane.f32.xlu0 %v96
  %v98 = vpop.xlane.xlu0 %97
  %v99 = vrcp.pop 32.0
  %v100 = vmul.f32 %v98, %v99
  %v101 = vsub.f32 %v91, %v100
  %v102 = vmul.f32 %v101, %v101
  %v103 = vsel %vm52, %v102, 0.0
  %104 = vadd.xlane.f32.xlu0 %v103
  %v105 = vpop.xlane.xlu0 %104
  %v106 = vmul.f32 %v105, %v99
  %v107 = vadd.f32 %v106, 1e-05
  %v108 = vrsqrt.pop %v107
  %v109 = vmul.f32 %v101, %v108
  %v110 = vld [vmem:[%s3] sm:$0x1]
  %v112 = vlaneseq
  %v113 = vshrl.u32 %v112, 7
  %v114 = vsub.s32 0, %v113
  %v115 = vrot.slane %v110, %v114
  %v117 = vmul.f32 %v109, %v115
  %v118 = vld [vmem:[%s4] sm:$0x1]
  %v120 = vlaneseq
  %v121 = vshrl.u32 %v120, 7
  %v122 = vsub.s32 0, %v121
  %v123 = vrot.slane %v118, %v122
  %v125 = vadd.f32 %v117, %v123
  %v126 = vpack.c.bf16 %v125, %v125
  %v127 = vld [vmem:[%s5] sm:$0xf]
  %v128 = vld [vmem:[%s5 + $0x4] sm:$0xf]
  %v129 = vld [vmem:[%s5 + $0x8] sm:$0xf]
  %v130 = vld [vmem:[%s5 + $0xc] sm:$0xf]
  %v131 = vld [vmem:[%s6] sm:$0x1]
  %v133 = vlaneseq
  %v134 = vshrl.u32 %v133, 7
  %v135 = vsub.s32 0, %v134
  %v136 = vrot.slane %v131, %v135
  %v142 = vunpack.c.l.b16 %v127
  %v143 = vunpack.c.l.b16 %v128
  %v144 = vunpack.c.l.b16 %v129
  %v145 = vunpack.c.l.b16 %v130
  %v146 = vpack.c.b16 %v143, %v142
  %v147 = vpack.c.b16 %v145, %v144
  %v151 = vsel %vm52, %v126, 0
  %153 = vmatprep.subr.bf16.mxu0 0
  %154 = vmatpush1.bf16.msra.mxu0 %v146
  %155 = vmatprep.subr.bf16.mxu0 0
  %156 = vmatpush1.bf16.msra.mxu0 %v147
  %157 = vmatprep.subr.bf16.mxu0 0
  %158 = vmatpush1.bf16.msra.mxu0 0
  %159 = vmatprep.subr.bf16.mxu0 0
  %160 = vmatpush1.bf16.msra.mxu0 0
  %161 = vmatprep.subr.bf16.mxu0 0
  %162 = vmatpush1.bf16.msra.mxu0 0
  %163 = vmatprep.subr.bf16.mxu0 0
  %164 = vmatpush1.bf16.msra.mxu0 0
  %165 = vmatprep.subr.bf16.mxu0 0
  %166 = vmatpush1.bf16.msra.mxu0 0
  %167 = vmatprep.subr.bf16.mxu0 0
  %168 = vmatpush1.bf16.msra.mxu0 0
  %169 = vmatprep.subr.bf16.mxu0 0
  %170 = vmatpush1.bf16.msra.mxu0 0
  %171 = vmatprep.subr.bf16.mxu0 0
  %172 = vmatpush1.bf16.msra.mxu0 0
  %173 = vmatprep.subr.bf16.mxu0 0
  %174 = vmatpush1.bf16.msra.mxu0 0
  %175 = vmatprep.subr.bf16.mxu0 0
  %176 = vmatpush1.bf16.msra.mxu0 0
  %177 = vmatprep.subr.bf16.mxu0 0
  %178 = vmatpush1.bf16.msra.mxu0 0
  %179 = vmatprep.subr.bf16.mxu0 0
  %180 = vmatpush1.bf16.msra.mxu0 0
  %181 = vmatprep.subr.bf16.mxu0 0
  %182 = vmatpush1.bf16.msra.mxu0 0
  %183 = vmatprep.subr.bf16.mxu0 0
  %184 = vmatpush1.bf16.msra.mxu0 0
  %185 = vmatprep.mubr.bf16.mxu0 0
  %186 = vmatmul.mubr.bf16.gmra.mrb[0].mxu0 %v151
  %v187 = vpop.f32.mrb[0].mxu0
  %v188 = vadd.f32 %v136, %v187
  %v189 = vpop.f32.mrb[0].mxu0
  %v190 = vpop.f32.mrb[0].mxu0
  %v191 = vpop.f32.mrb[0].mxu0
  %192 = vdwg.mxu0
  %193 = vst [vmem:[%s7] sm:$0xff] %v188
  // Predicated region
  $region30: #{classification_head.1} parent=0 // pred_check
    _
  $region31: #{classification_head.1} parent=0 // pred_check_branch
    %195 = sbr.rel (0) target = $region33
  $region32: #{classification_head.1} parent=0 // pred_region
    _
  $region33: #{classification_head.1} parent=0 // pred_fallthru
    _
  // Predicated region
  $region34: #{classification_head.1} parent=0 // pred_check
    _
  $region35: #{classification_head.1} parent=0 // pred_check_branch
    %197 = sbr.rel (0) target = $region37
  $region36: #{classification_head.1} parent=0 // pred_region
    _
  $region37: #{classification_head.1} parent=0 // pred_fallthru
    _

</llo_original>
